<compile_context>
chip_gen: v7x
topology: tpu7x:2x2x1
jax: 0.10.0
libtpu: 0.0.40
codegen_flags: <defaults>
</compile_context>

<pallas_src>
import functools

import numpy as np

import jax
import jax.numpy as jnp
from jax.experimental import pallas as pl
from jax.experimental.pallas import tpu as pltpu


def _cdiv(a, b):
    return -(-a // b)


def _round_up(x, m):
    return ((x + m - 1) // m) * m


def _nll_sum_kernel(e_ref, pred_ref, tgt_ref, sum_ref, acc_ref, *, pack):
    """One grid step of the chunked NLL sum reduction.

    e_ref    : (pack, lane_w) f32   constant copy matrix E[j, l] = [l // C == j]
    pred_ref : (tile_rows, lane_w)  pred dtype, lane-dense packed log-probs
    tgt_ref  : (tile_rows, pack)    int32, lane-adjusted targets (invalid = -1)
    sum_ref  : (1, 1) f32           per-chunk sum of picked log-probs
    acc_ref  : (tile_rows, lane_w)  f32 VMEM accumulator
    """
    s = pl.program_id(1)

    @pl.when(s == 0)
    def _():
        acc_ref[...] = jnp.zeros_like(acc_ref)

    pred = pred_ref[...].astype(jnp.float32)          # cast in-kernel only
    tile_rows, lane_w = pred.shape
    col = jax.lax.broadcasted_iota(jnp.int32, (tile_rows, lane_w), 1)

    if pack == 1:
        # Block lane width == full class width; compare lane id to target.
        mask = col == tgt_ref[...]                    # (R, C) vs (R, 1)
    else:
        # Expand compact (R, pack) lane-targets to lane width with one tiny
        # MXU matmul against the constant copy matrix. Exact for small ints.
        expanded = jnp.dot(tgt_ref[...].astype(jnp.float32), e_ref[...],
                           preferred_element_type=jnp.float32)
        mask = jnp.abs(expanded - col.astype(jnp.float32)) < 0.5

    # Pure VPU accumulation (no per-step cross-lane reduce).
    acc_ref[...] += jnp.where(mask, pred, 0.0)

    @pl.when(s == pl.num_programs(1) - 1)
    def _():
        rows = jnp.sum(acc_ref[...], axis=1, keepdims=True)   # (tile_rows, 1)
        sum_ref[...] = jnp.sum(rows, axis=0, keepdims=True)   # (1, 1)


def nll_loss_pallas(pred, target, trans_feat=None, weight=None, *,
                    tile_rows=None, num_chunks=2):
    """-mean(pred[i, target[i]]) over rows with target in [0, C).

    trans_feat / weight are accepted but unused, matching the torch module.
    """
    del trans_feat, weight  # F.nll_loss(pred, target) ignores them
    n, c = pred.shape
    tgt = target.reshape(-1).astype(jnp.int32)

    # Valid-row count: tiny plain-XLA reduction over the int32 targets, so the
    # kernel does not need a second full-tile accumulator.
    count = jnp.sum(((tgt >= 0) & (tgt < c)).astype(jnp.float32))

    pack = 128 // c if (c <= 128 and 128 % c == 0) else 1
    lane_w = pack * c
    itemsize = jnp.dtype(pred.dtype).itemsize

    packed_rows = _cdiv(n, pack)
    if tile_rows is None:
        tile_rows = (2 * 1024 * 1024) // max(1, lane_w * itemsize)
    tile_rows = int(max(8, min(int(tile_rows), 4096, _round_up(packed_rows, 8))))
    tile_rows = _round_up(tile_rows, 8)

    steps_total = _cdiv(packed_rows, tile_rows)
    num_chunks = max(1, min(int(num_chunks), steps_total))
    steps_per_chunk = _cdiv(steps_total, num_chunks)
    padded_rows = num_chunks * steps_per_chunk * tile_rows
    padded_n = padded_rows * pack

    if padded_n != n:
        # Padded rows get target = -1 -> no lane matches -> excluded from
        # both the sum and the mean denominator.
        pred = jnp.pad(pred, ((0, padded_n - n), (0, 0)))
        tgt = jnp.pad(tgt, (0, padded_n - n), constant_values=-1)

    # Lane-adjust targets in the wrapper: row j (within a packed row) matches
    # lane j*C + tgt.  Invalid rows (ignore_index, out of range, padding) -> -1.
    valid = (tgt >= 0) & (tgt < c)
    lane_off = (jnp.arange(padded_n, dtype=jnp.int32) % pack) * c
    tgt_adj = jnp.where(valid, tgt + lane_off, -1)

    pred_packed = pred.reshape(padded_rows, lane_w)   # free, contiguous reshape
    tgt_packed = tgt_adj.reshape(padded_rows, pack)

    # Constant copy/expansion matrix (built host-side, DMA'd once).
    e_np = (np.arange(lane_w)[None, :] // c == np.arange(pack)[:, None])
    e_mat = jnp.asarray(e_np.astype(np.float32))

    kernel = functools.partial(_nll_sum_kernel, pack=pack)

    bytes_accessed = (pred_packed.size * itemsize + tgt_packed.size * 4
                      + e_mat.size * 4 + num_chunks * 4)
    cost = pl.CostEstimate(flops=int(2 * padded_rows * pack * lane_w),
                           transcendentals=0,
                           bytes_accessed=int(bytes_accessed))

    sums = pl.pallas_call(
        kernel,
        out_shape=jax.ShapeDtypeStruct((num_chunks, 1), jnp.float32),
        grid_spec=pltpu.PrefetchScalarGridSpec(
            num_scalar_prefetch=0,
            grid=(num_chunks, steps_per_chunk),
            in_specs=[
                pl.BlockSpec((pack, lane_w), lambda ci, si: (0, 0)),
                pl.BlockSpec((tile_rows, lane_w),
                             lambda ci, si: (ci * steps_per_chunk + si, 0)),
                pl.BlockSpec((tile_rows, pack),
                             lambda ci, si: (ci * steps_per_chunk + si, 0)),
            ],
            out_specs=pl.BlockSpec((1, 1), lambda ci, si: (ci, 0)),
            scratch_shapes=[pltpu.VMEM((tile_rows, lane_w), jnp.float32)],
        ),
        compiler_params=pltpu.CompilerParams(
            dimension_semantics=("parallel", "arbitrary")),
        cost_estimate=cost,
    )(e_mat, pred_packed, tgt_packed)

    total = jnp.sum(sums)
    # 0/0 -> nan if every row is ignored, matching torch behavior.
    return -total / count


def _nll_ref(pred, target, ignore_index=-100):
    """Plain-JAX reference with F.nll_loss(mean, ignore_index=-100) semantics."""
    pred = pred.astype(jnp.float32)
    n, c = pred.shape
    valid = (target >= 0) & (target < c) & (target != ignore_index)
    t = jnp.clip(target, 0, c - 1)
    picked = pred[jnp.arange(n), t]
    picked = jnp.where(valid, picked, 0.0)
    return -jnp.sum(picked) / jnp.sum(valid)


if __name__ == "__main__":
    key = jax.random.PRNGKey(0)
    k1, k2, k3, k4, k5 = jax.random.split(key, 5)

    # --- Check 1: realistic pointnet2 sem-seg shapes: 13 classes (C ∤ 128) ---
    # pred: (B*N_points, num_classes) log-probs (f32); target: class indices.
    N, C = 128, 13
    logits = jax.random.normal(k1, (N, C), dtype=jnp.float32)
    pred = jax.nn.log_softmax(logits, axis=-1)
    target = jax.random.randint(k2, (N,), 0, C, dtype=jnp.int32)
    trans_feat = jax.random.normal(k3, (2, 8, 8), dtype=jnp.float32)  # unused
    weight = jnp.ones((C,), dtype=jnp.float32)                        # unused

    loss1 = jax.block_until_ready(nll_loss_pallas(pred, target, trans_feat, weight))
    ref1 = _nll_ref(pred, target)
    assert jnp.allclose(loss1, ref1, atol=1e-5, rtol=1e-5), (loss1, ref1)

    # --- Check 2: bf16 pred, C=16 (lane-dense packed path), ignore rows,
    #              row padding and a multi-chunk / multi-step grid ------------
    N2, C2 = 250, 16
    logits2 = jax.random.normal(k4, (N2, C2), dtype=jnp.float32)
    pred2 = jax.nn.log_softmax(logits2, axis=-1).astype(jnp.bfloat16)
    target2 = jax.random.randint(k5, (N2,), 0, C2, dtype=jnp.int32)
    target2 = jnp.where(jnp.arange(N2) % 7 == 0, -100, target2)  # ignored rows
    loss2 = jax.block_until_ready(
        nll_loss_pallas(pred2, target2, trans_feat, weight,
                        tile_rows=8, num_chunks=2))
    ref2 = _nll_ref(pred2, target2)
    assert jnp.allclose(loss2, ref2, atol=1e-4, rtol=1e-4), (loss2, ref2)

    print("KERNEL_OK")
</pallas_src>

<mosaic_0001>
module attributes {stable_mosaic.version = 11 : i64} {
  func.func @_nll_sum_kernel(%arg0: i32, %arg1: i32, %arg2: memref<1x13xf32, #tpu.memory_space<vmem>>, %arg3: memref<128x13xf32, #tpu.memory_space<vmem>>, %arg4: memref<128x1xi32, #tpu.memory_space<vmem>>, %arg5: memref<1x1xf32, #tpu.memory_space<vmem>>, %arg6: memref<128x13xf32, #tpu.memory_space<vmem>>) attributes {dimension_semantics = [#tpu.dimension_semantics<parallel>, #tpu.dimension_semantics<arbitrary>], iteration_bounds = array<i64: 1, 1>, scalar_prefetch = 0 : i64, scratch_operands = 1 : i64, tpu.core_type = #tpu.core_type<tc>, window_params = [{pipeline_mode = #tpu.pipeline_mode<synchronous>, transform_indices = @transform_0, window_bounds = array<i64: 1, 13>}, {transform_indices = @transform_1, window_bounds = array<i64: 128, 13>}, {transform_indices = @transform_2, window_bounds = array<i64: 128, 1>}, {transform_indices = @transform_3, window_bounds = array<i64: 1, 1>}]} {
    %c0_i32 = arith.constant 0 : i32
    %0 = arith.cmpi eq, %arg1, %c0_i32 : i32
    %1 = arith.extui %0 : i1 to i32
    %c0_i32_0 = arith.constant 0 : i32
    %2 = arith.cmpi ne, %1, %c0_i32_0 : i32
    scf.if %2 {
      %cst_10 = arith.constant 0.000000e+00 : f32
      %16 = vector.broadcast %cst_10 : f32 to vector<128x13xf32>
      %c0_11 = arith.constant 0 : index
      %c0_12 = arith.constant 0 : index
      %17 = vector.load %arg6[%c0_11, %c0_12] : memref<128x13xf32, #tpu.memory_space<vmem>>, vector<128x13xf32>
      tpu.vector_store %arg6[%c0_11, %c0_12], %16 {strides = array<i32>} : memref<128x13xf32, #tpu.memory_space<vmem>>, vector<128x13xf32>,
    } else {
    }
    %c0 = arith.constant 0 : index
    %c0_1 = arith.constant 0 : index
    %3 = vector.load %arg3[%c0, %c0_1] : memref<128x13xf32, #tpu.memory_space<vmem>>, vector<128x13xf32>
    %4 = tpu.iota {dimensions = array<i32: 1>} : vector<128x13xi32>
    %c0_2 = arith.constant 0 : index
    %c0_3 = arith.constant 0 : index
    %5 = vector.load %arg4[%c0_2, %c0_3] : memref<128x1xi32, #tpu.memory_space<vmem>>, vector<128x1xi32>
    %6 = vector.broadcast %5 : vector<128x1xi32> to vector<128x13xi32>
    %7 = arith.cmpi eq, %4, %6 : vector<128x13xi32>
    %c0_4 = arith.constant 0 : index
    %c0_5 = arith.constant 0 : index
    %8 = vector.load %arg6[%c0_4, %c0_5] : memref<128x13xf32, #tpu.memory_space<vmem>>, vector<128x13xf32>
    %cst = arith.constant 0.000000e+00 : f32
    %9 = vector.broadcast %cst : f32 to vector<128x13xf32>
    %10 = arith.select %7, %3, %9 : vector<128x13xi1>, vector<128x13xf32>
    %11 = arith.addf %8, %10 : vector<128x13xf32>
    %c0_6 = arith.constant 0 : index
    %c0_7 = arith.constant 0 : index
    %12 = vector.load %arg6[%c0_6, %c0_7] : memref<128x13xf32, #tpu.memory_space<vmem>>, vector<128x13xf32>
    tpu.vector_store %arg6[%c0_6, %c0_7], %11 {strides = array<i32>} : memref<128x13xf32, #tpu.memory_space<vmem>>, vector<128x13xf32>,
    %c0_i32_8 = arith.constant 0 : i32
    %13 = arith.cmpi eq, %arg1, %c0_i32_8 : i32
    %14 = arith.extui %13 : i1 to i32
    %c0_i32_9 = arith.constant 0 : i32
    %15 = arith.cmpi ne, %14, %c0_i32_9 : i32
    scf.if %15 {
      %c0_10 = arith.constant 0 : index
      %c0_11 = arith.constant 0 : index
      %16 = vector.load %arg6[%c0_10, %c0_11] : memref<128x13xf32, #tpu.memory_space<vmem>>, vector<128x13xf32>
      %cst_12 = arith.constant dense<0.000000e+00> : vector<128xf32>
      %17 = vector.multi_reduction <add>, %16, %cst_12 [1] : vector<128x13xf32> to vector<128xf32>
      %18 = vector.shape_cast %17 : vector<128xf32> to vector<128x1xf32>
      %cst_13 = arith.constant dense<0.000000e+00> : vector<1xf32>
      %19 = vector.multi_reduction <add>, %18, %cst_13 [0] : vector<128x1xf32> to vector<1xf32>
      %20 = vector.shape_cast %19 : vector<1xf32> to vector<1x1xf32>
      %c0_14 = arith.constant 0 : index
      %c0_15 = arith.constant 0 : index
      %21 = vector.load %arg5[%c0_14, %c0_15] : memref<1x1xf32, #tpu.memory_space<vmem>>, vector<1x1xf32>
      tpu.vector_store %arg5[%c0_14, %c0_15], %20 {strides = array<i32>} : memref<1x1xf32, #tpu.memory_space<vmem>>, vector<1x1xf32>,
    } else {
    }
    return
  }
  func.func @transform_0(%arg0: i32, %arg1: i32) -> (i32, i32) {
    %c0_i32 = arith.constant 0 : i32
    %c0_i32_0 = arith.constant 0 : i32
    %c0_i32_1 = arith.constant 0 : i32
    return %c0_i32, %c0_i32_0 : i32, i32
  }
  func.func @transform_1(%arg0: i32, %arg1: i32) -> (i32, i32) {
    %c1_i32 = arith.constant 1 : i32
    %0 = arith.muli %arg0, %c1_i32 : i32
    %1 = arith.addi %0, %arg1 : i32
    %c0_i32 = arith.constant 0 : i32
    %c0_i32_0 = arith.constant 0 : i32
    return %1, %c0_i32 : i32, i32
  }
  func.func @transform_2(%arg0: i32, %arg1: i32) -> (i32, i32) {
    %c1_i32 = arith.constant 1 : i32
    %0 = arith.muli %arg0, %c1_i32 : i32
    %1 = arith.addi %0, %arg1 : i32
    %c0_i32 = arith.constant 0 : i32
    %c0_i32_0 = arith.constant 0 : i32
    return %1, %c0_i32 : i32, i32
  }
  func.func @transform_3(%arg0: i32, %arg1: i32) -> (i32, i32) {
    %c0_i32 = arith.constant 0 : i32
    %c0_i32_0 = arith.constant 0 : i32
    return %arg0, %c0_i32 : i32, i32
  }
}

</mosaic_0001>

<llo_original>
// kernel: tpu_custom_call.1
$region0: #{tpu_custom_call.1}
  #allocation0 [shape = 'u32[]', space=smem, size = 0x4, offset = 0x4, fixed_abs, tag = 'smem constant byte address 0x4 - core index']
  #allocation1 [shape = 'u32[144,128]{1,0:T(1,128)}', space=vmem, size = 0x12000, scoped, tag = 'internal scratch']
  #allocation2 [shape = 'f32[128,13]{1,0:T(8,128)}', space=vmem, size = 0x10000, scoped, tag = 'scratch operand']
  %s0 = inlined_call_operand.vmem [shape: f32[1,13], index: 0, kind: input, shape index: {}]
  %s1 = inlined_call_operand.vmem [shape: f32[128,13], index: 1, kind: input, shape index: {}]
  %s2 = inlined_call_operand.vmem [shape: s32[128,1], index: 2, kind: input, shape index: {}]
  %s3 = inlined_call_operand.hbm [shape: f32[1,1], index: 3, kind: output, shape index: {}]
  %s4 = sld [smem:[#allocation0]]
  $region30: #{tpu_custom_call.1} parent=0
    _
  %s6 = ssub.s32 1, %s4
  %s7 = scalar_select 0, %s6, %s4
  $region1: #{tpu_custom_call.1} parent=0
    #allocation3 [shape = 'u8[512]{0}', space=vmem, size = 0x400, scoped, tag = 'output window, operand 0, single buffered']
    #allocation4 [shape = 's32[1]{0}', space=sflag, size = 0x4, scoped, tag = 'scoped memory for tpu_custom_call.1']
    %8 = vsyncpa [#allocation4], 0
    // Predicated region
    $region2: #{tpu_custom_call.1} parent=1 // pred_check
      _
    $region3: #{tpu_custom_call.1} parent=1 // pred_check_branch
      %10 = sbr.rel (0) target = $region5
    $region4: #{tpu_custom_call.1} parent=1 // pred_region
      _
    $region5: #{tpu_custom_call.1} parent=1 // pred_fallthru
      _
    // Predicated region
    $region6: #{tpu_custom_call.1} parent=1 // pred_check
      _
    $region7: #{tpu_custom_call.1} parent=1 // pred_check_branch
      %12 = sbr.rel (0) target = $region9
    $region8: #{tpu_custom_call.1} parent=1 // pred_region
      %s13 = sadd.s32 0, 0
      %s14 = smul.u32 16, %s13
      %p15 = scmp.lt.s32.totalorder %s14, 15
      %s16 = scalar_select %p15, %s14, 15
      %s17 = smul.addr %s16, 8
      %s18 = scalar_lea.vmem %s1, %s17
      %s19 = sadd.s32 0, 0
      %s20 = smul.u32 16, %s19
    $region9: #{tpu_custom_call.1} parent=1 // pred_fallthru
      _
    // Predicated region
    $region10: #{tpu_custom_call.1} parent=1 // pred_check
      _
    $region11: #{tpu_custom_call.1} parent=1 // pred_check_branch
      %22 = sbr.rel (0) target = $region13
    $region12: #{tpu_custom_call.1} parent=1 // pred_region
      %s23 = sadd.s32 0, 0
      %s24 = smul.u32 16, %s23
      %p25 = scmp.lt.s32.totalorder %s24, 15
      %s26 = scalar_select %p25, %s24, 15
      %s27 = smul.addr %s26, 8
      %s28 = scalar_lea.vmem %s2, %s27
      %s29 = sadd.s32 0, 0
      %s30 = smul.u32 16, %s29
    $region13: #{tpu_custom_call.1} parent=1 // pred_fallthru
      _
    %s31 = sadd.s32 0, 0
    %s32 = smul.u32 16, %s31
    %p33 = scmp.lt.s32.totalorder %s32, 15
    %s34 = scalar_select %p33, %s32, 15
    %s35 = smul.addr %s34, 8
    %s36 = scalar_lea.vmem %s1, %s35
    %s37 = sadd.s32 0, 0
    %s38 = smul.u32 16, %s37
    %p39 = scmp.lt.s32.totalorder %s38, 15
    %s40 = scalar_select %p39, %s38, 15
    %s41 = smul.addr %s40, 8
    %s42 = scalar_lea.vmem %s2, %s41
    %s43 = sadd.s32 0, 0
    %s44 = smul.u32 16, %s43
    %p45 = scmp.lt.s32.totalorder %s44, 15
    %s46 = scalar_select %p45, %s44, 15
    %s47 = smul.addr %s46, 8
    %s48 = scalar_lea.vmem %s1, %s47
    %s49 = sadd.s32 0, 0
    %s50 = smul.u32 16, %s49
    %s51 = sadd.s32 0, 0
    %s52 = smul.u32 16, %s51
    %p53 = scmp.lt.s32.totalorder %s52, 15
    %s54 = scalar_select %p53, %s52, 15
    %s55 = smul.addr %s54, 8
    %s56 = scalar_lea.vmem %s2, %s55
    %s57 = sadd.s32 0, 0
    %s58 = smul.u32 16, %s57
    %p59 = scmp.eq.s32.totalorder 0, 0
    // Predicated region
    $region14: #{tpu_custom_call.1} parent=1 // pred_check
      %p60 = pneg %p59
    $region15: #{tpu_custom_call.1} parent=1 // pred_check_branch
      %62 = sbr.rel (%p60) target = $region17
    $region16: #{tpu_custom_call.1} parent=1 // pred_region
      %vm63 = vcmask 105472
      %64 = vst.msk [vmem:[#allocation2] sm:$0xff] %vm63, 0.0
      %65 = vst.msk [vmem:[#allocation2 + $0x8] sm:$0xff] %vm63, 0.0
      %66 = vst.msk [vmem:[#allocation2 + $0x10] sm:$0xff] %vm63, 0.0
      %67 = vst.msk [vmem:[#allocation2 + $0x18] sm:$0xff] %vm63, 0.0
      %68 = vst.msk [vmem:[#allocation2 + $0x20] sm:$0xff] %vm63, 0.0
      %69 = vst.msk [vmem:[#allocation2 + $0x28] sm:$0xff] %vm63, 0.0
      %70 = vst.msk [vmem:[#allocation2 + $0x30] sm:$0xff] %vm63, 0.0
      %71 = vst.msk [vmem:[#allocation2 + $0x38] sm:$0xff] %vm63, 0.0
      %72 = vst.msk [vmem:[#allocation2 + $0x40] sm:$0xff] %vm63, 0.0
      %73 = vst.msk [vmem:[#allocation2 + $0x48] sm:$0xff] %vm63, 0.0
      %74 = vst.msk [vmem:[#allocation2 + $0x50] sm:$0xff] %vm63, 0.0
      %75 = vst.msk [vmem:[#allocation2 + $0x58] sm:$0xff] %vm63, 0.0
      %76 = vst.msk [vmem:[#allocation2 + $0x60] sm:$0xff] %vm63, 0.0
      %77 = vst.msk [vmem:[#allocation2 + $0x68] sm:$0xff] %vm63, 0.0
      %78 = vst.msk [vmem:[#allocation2 + $0x70] sm:$0xff] %vm63, 0.0
      %79 = vst.msk [vmem:[#allocation2 + $0x78] sm:$0xff] %vm63, 0.0
    $region17: #{tpu_custom_call.1} parent=1 // pred_fallthru
      _
    %v80 = vld [vmem:[%s48] sm:$0xff]
    %v81 = vld [vmem:[%s48 + $0x8] sm:$0xff]
    %v82 = vld [vmem:[%s48 + $0x10] sm:$0xff]
    %v83 = vld [vmem:[%s48 + $0x18] sm:$0xff]
    %v84 = vld [vmem:[%s48 + $0x20] sm:$0xff]
    %v85 = vld [vmem:[%s48 + $0x28] sm:$0xff]
    %v86 = vld [vmem:[%s48 + $0x30] sm:$0xff]
    %v87 = vld [vmem:[%s48 + $0x38] sm:$0xff]
    %v88 = vld [vmem:[%s48 + $0x40] sm:$0xff]
    %v89 = vld [vmem:[%s48 + $0x48] sm:$0xff]
    %v90 = vld [vmem:[%s48 + $0x50] sm:$0xff]
    %v91 = vld [vmem:[%s48 + $0x58] sm:$0xff]
    %v92 = vld [vmem:[%s48 + $0x60] sm:$0xff]
    %v93 = vld [vmem:[%s48 + $0x68] sm:$0xff]
    %v94 = vld [vmem:[%s48 + $0x70] sm:$0xff]
    %v95 = vld [vmem:[%s48 + $0x78] sm:$0xff]
    %v96 = vlaneseq
    %v97 = vand.u32 %v96, 127
    %v98 = vld [vmem:[%s56] sm:$0xff]
    %v99 = vld [vmem:[%s56 + $0x8] sm:$0xff]
    %v100 = vld [vmem:[%s56 + $0x10] sm:$0xff]
    %v101 = vld [vmem:[%s56 + $0x18] sm:$0xff]
    %v102 = vld [vmem:[%s56 + $0x20] sm:$0xff]
    %v103 = vld [vmem:[%s56 + $0x28] sm:$0xff]
    %v104 = vld [vmem:[%s56 + $0x30] sm:$0xff]
    %v105 = vld [vmem:[%s56 + $0x38] sm:$0xff]
    %v106 = vld [vmem:[%s56 + $0x40] sm:$0xff]
    %v107 = vld [vmem:[%s56 + $0x48] sm:$0xff]
    %v108 = vld [vmem:[%s56 + $0x50] sm:$0xff]
    %v109 = vld [vmem:[%s56 + $0x58] sm:$0xff]
    %v110 = vld [vmem:[%s56 + $0x60] sm:$0xff]
    %v111 = vld [vmem:[%s56 + $0x68] sm:$0xff]
    %v112 = vld [vmem:[%s56 + $0x70] sm:$0xff]
    %v113 = vld [vmem:[%s56 + $0x78] sm:$0xff]
    %114 = vset.pattern.permute.xlu0 0
    %115 = vperm.xlu0 %114, %v98
    %v116 = vpop.permute.xlu0 %115
    %117 = vset.pattern.permute.xlu0 0
    %118 = vperm.xlu0 %117, %v99
    %v119 = vpop.permute.xlu0 %118
    %120 = vset.pattern.permute.xlu0 0
    %121 = vperm.xlu0 %120, %v100
    %v122 = vpop.permute.xlu0 %121
    %123 = vset.pattern.permute.xlu0 0
    %124 = vperm.xlu0 %123, %v101
    %v125 = vpop.permute.xlu0 %124
    %126 = vset.pattern.permute.xlu0 0
    %127 = vperm.xlu0 %126, %v102
    %v128 = vpop.permute.xlu0 %127
    %129 = vset.pattern.permute.xlu0 0
    %130 = vperm.xlu0 %129, %v103
    %v131 = vpop.permute.xlu0 %130
    %132 = vset.pattern.permute.xlu0 0
    %133 = vperm.xlu0 %132, %v104
    %v134 = vpop.permute.xlu0 %133
    %135 = vset.pattern.permute.xlu0 0
    %136 = vperm.xlu0 %135, %v105
    %v137 = vpop.permute.xlu0 %136
    %138 = vset.pattern.permute.xlu0 0
    %139 = vperm.xlu0 %138, %v106
    %v140 = vpop.permute.xlu0 %139
    %141 = vset.pattern.permute.xlu0 0
    %142 = vperm.xlu0 %141, %v107
    %v143 = vpop.permute.xlu0 %142
    %144 = vset.pattern.permute.xlu0 0
    %145 = vperm.xlu0 %144, %v108
    %v146 = vpop.permute.xlu0 %145
    %147 = vset.pattern.permute.xlu0 0
    %148 = vperm.xlu0 %147, %v109
    %v149 = vpop.permute.xlu0 %148
    %150 = vset.pattern.permute.xlu0 0
    %151 = vperm.xlu0 %150, %v110
    %v152 = vpop.permute.xlu0 %151
    %153 = vset.pattern.permute.xlu0 0
    %154 = vperm.xlu0 %153, %v111
    %v155 = vpop.permute.xlu0 %154
    %156 = vset.pattern.permute.xlu0 0
    %157 = vperm.xlu0 %156, %v112
    %v158 = vpop.permute.xlu0 %157
    %159 = vset.pattern.permute.xlu0 0
    %160 = vperm.xlu0 %159, %v113
    %v161 = vpop.permute.xlu0 %160
    %vm162 = vcmp.eq.s32.totalorder %v97, %v116
    %vm163 = vcmp.eq.s32.totalorder %v97, %v119
    %vm164 = vcmp.eq.s32.totalorder %v97, %v122
    %vm165 = vcmp.eq.s32.totalorder %v97, %v125
    %vm166 = vcmp.eq.s32.totalorder %v97, %v128
    %vm167 = vcmp.eq.s32.totalorder %v97, %v131
    %vm168 = vcmp.eq.s32.totalorder %v97, %v134
    %vm169 = vcmp.eq.s32.totalorder %v97, %v137
    %vm170 = vcmp.eq.s32.totalorder %v97, %v140
    %vm171 = vcmp.eq.s32.totalorder %v97, %v143
    %vm172 = vcmp.eq.s32.totalorder %v97, %v146
    %vm173 = vcmp.eq.s32.totalorder %v97, %v149
    %vm174 = vcmp.eq.s32.totalorder %v97, %v152
    %vm175 = vcmp.eq.s32.totalorder %v97, %v155
    %vm176 = vcmp.eq.s32.totalorder %v97, %v158
    %vm177 = vcmp.eq.s32.totalorder %v97, %v161
    %v178 = vld [vmem:[#allocation2] sm:$0xff]
    %v179 = vld [vmem:[#allocation2 + $0x8] sm:$0xff]
    %v180 = vld [vmem:[#allocation2 + $0x10] sm:$0xff]
    %v181 = vld [vmem:[#allocation2 + $0x18] sm:$0xff]
    %v182 = vld [vmem:[#allocation2 + $0x20] sm:$0xff]
    %v183 = vld [vmem:[#allocation2 + $0x28] sm:$0xff]
    %v184 = vld [vmem:[#allocation2 + $0x30] sm:$0xff]
    %v185 = vld [vmem:[#allocation2 + $0x38] sm:$0xff]
    %v186 = vld [vmem:[#allocation2 + $0x40] sm:$0xff]
    %v187 = vld [vmem:[#allocation2 + $0x48] sm:$0xff]
    %v188 = vld [vmem:[#allocation2 + $0x50] sm:$0xff]
    %v189 = vld [vmem:[#allocation2 + $0x58] sm:$0xff]
    %v190 = vld [vmem:[#allocation2 + $0x60] sm:$0xff]
    %v191 = vld [vmem:[#allocation2 + $0x68] sm:$0xff]
    %v192 = vld [vmem:[#allocation2 + $0x70] sm:$0xff]
    %v193 = vld [vmem:[#allocation2 + $0x78] sm:$0xff]
    %v194 = vsel %vm162, %v80, 0.0
    %v195 = vsel %vm163, %v81, 0.0
    %v196 = vsel %vm164, %v82, 0.0
    %v197 = vsel %vm165, %v83, 0.0
    %v198 = vsel %vm166, %v84, 0.0
    %v199 = vsel %vm167, %v85, 0.0
    %v200 = vsel %vm168, %v86, 0.0
    %v201 = vsel %vm169, %v87, 0.0
    %v202 = vsel %vm170, %v88, 0.0
    %v203 = vsel %vm171, %v89, 0.0
    %v204 = vsel %vm172, %v90, 0.0
    %v205 = vsel %vm173, %v91, 0.0
    %v206 = vsel %vm174, %v92, 0.0
    %v207 = vsel %vm175, %v93, 0.0
    %v208 = vsel %vm176, %v94, 0.0
    %v209 = vsel %vm177, %v95, 0.0
    %v210 = vadd.f32 %v178, %v194
    %v211 = vadd.f32 %v179, %v195
    %v212 = vadd.f32 %v180, %v196
    %v213 = vadd.f32 %v181, %v197
    %v214 = vadd.f32 %v182, %v198
    %v215 = vadd.f32 %v183, %v199
    %v216 = vadd.f32 %v184, %v200
    %v217 = vadd.f32 %v185, %v201
    %v218 = vadd.f32 %v186, %v202
    %v219 = vadd.f32 %v187, %v203
    %v220 = vadd.f32 %v188, %v204
    %v221 = vadd.f32 %v189, %v205
    %v222 = vadd.f32 %v190, %v206
    %v223 = vadd.f32 %v191, %v207
    %v224 = vadd.f32 %v192, %v208
    %v225 = vadd.f32 %v193, %v209
    %vm226 = vcmask 105472
    %227 = vst.msk [vmem:[#allocation2] sm:$0xff] %vm226, %v210
    %228 = vst.msk [vmem:[#allocation2 + $0x8] sm:$0xff] %vm226, %v211
    %229 = vst.msk [vmem:[#allocation2 + $0x10] sm:$0xff] %vm226, %v212
    %230 = vst.msk [vmem:[#allocation2 + $0x18] sm:$0xff] %vm226, %v213
    %231 = vst.msk [vmem:[#allocation2 + $0x20] sm:$0xff] %vm226, %v214
    %232 = vst.msk [vmem:[#allocation2 + $0x28] sm:$0xff] %vm226, %v215
    %233 = vst.msk [vmem:[#allocation2 + $0x30] sm:$0xff] %vm226, %v216
    %234 = vst.msk [vmem:[#allocation2 + $0x38] sm:$0xff] %vm226, %v217
    %235 = vst.msk [vmem:[#allocation2 + $0x40] sm:$0xff] %vm226, %v218
    %236 = vst.msk [vmem:[#allocation2 + $0x48] sm:$0xff] %vm226, %v219
    %237 = vst.msk [vmem:[#allocation2 + $0x50] sm:$0xff] %vm226, %v220
    %238 = vst.msk [vmem:[#allocation2 + $0x58] sm:$0xff] %vm226, %v221
    %239 = vst.msk [vmem:[#allocation2 + $0x60] sm:$0xff] %vm226, %v222
    %240 = vst.msk [vmem:[#allocation2 + $0x68] sm:$0xff] %vm226, %v223
    %241 = vst.msk [vmem:[#allocation2 + $0x70] sm:$0xff] %vm226, %v224
    %242 = vst.msk [vmem:[#allocation2 + $0x78] sm:$0xff] %vm226, %v225
    // Predicated region
    $region18: #{tpu_custom_call.1} parent=1 // pred_check
      %p243 = pneg %p59
    $region19: #{tpu_custom_call.1} parent=1 // pred_check_branch
      %245 = sbr.rel (%p243) target = $region21
    $region20: #{tpu_custom_call.1} parent=1 // pred_region
      %v246 = vld [vmem:[#allocation2] sm:$0xff]
      %v247 = vld [vmem:[#allocation2 + $0x8] sm:$0xff]
      %v248 = vld [vmem:[#allocation2 + $0x10] sm:$0xff]
      %v249 = vld [vmem:[#allocation2 + $0x18] sm:$0xff]
      %v250 = vld [vmem:[#allocation2 + $0x20] sm:$0xff]
      %v251 = vld [vmem:[#allocation2 + $0x28] sm:$0xff]
      %v252 = vld [vmem:[#allocation2 + $0x30] sm:$0xff]
      %v253 = vld [vmem:[#allocation2 + $0x38] sm:$0xff]
      %v254 = vld [vmem:[#allocation2 + $0x40] sm:$0xff]
      %v255 = vld [vmem:[#allocation2 + $0x48] sm:$0xff]
      %v256 = vld [vmem:[#allocation2 + $0x50] sm:$0xff]
      %v257 = vld [vmem:[#allocation2 + $0x58] sm:$0xff]
      %v258 = vld [vmem:[#allocation2 + $0x60] sm:$0xff]
      %v259 = vld [vmem:[#allocation2 + $0x68] sm:$0xff]
      %v260 = vld [vmem:[#allocation2 + $0x70] sm:$0xff]
      %v261 = vld [vmem:[#allocation2 + $0x78] sm:$0xff]
      %v262 = vsel %vm226, %v246, 0.0
      %263 = vadd.xlane.f32.xlu0 %v262
      %v264 = vpop.xlane.xlu0 %263
      %v265 = vsel %vm226, %v247, 0.0
      %266 = vadd.xlane.f32.xlu0 %v265
      %v267 = vpop.xlane.xlu0 %266
      %v268 = vsel %vm226, %v248, 0.0
      %269 = vadd.xlane.f32.xlu0 %v268
      %v270 = vpop.xlane.xlu0 %269
      %v271 = vsel %vm226, %v249, 0.0
      %272 = vadd.xlane.f32.xlu0 %v271
      %v273 = vpop.xlane.xlu0 %272
      %v274 = vsel %vm226, %v250, 0.0
      %275 = vadd.xlane.f32.xlu0 %v274
      %v276 = vpop.xlane.xlu0 %275
      %v277 = vsel %vm226, %v251, 0.0
      %278 = vadd.xlane.f32.xlu0 %v277
      %v279 = vpop.xlane.xlu0 %278
      %v280 = vsel %vm226, %v252, 0.0
      %281 = vadd.xlane.f32.xlu0 %v280
      %v282 = vpop.xlane.xlu0 %281
      %v283 = vsel %vm226, %v253, 0.0
      %284 = vadd.xlane.f32.xlu0 %v283
      %v285 = vpop.xlane.xlu0 %284
      %v286 = vsel %vm226, %v254, 0.0
      %287 = vadd.xlane.f32.xlu0 %v286
      %v288 = vpop.xlane.xlu0 %287
      %v289 = vsel %vm226, %v255, 0.0
      %290 = vadd.xlane.f32.xlu0 %v289
      %v291 = vpop.xlane.xlu0 %290
      %v292 = vsel %vm226, %v256, 0.0
      %293 = vadd.xlane.f32.xlu0 %v292
      %v294 = vpop.xlane.xlu0 %293
      %v295 = vsel %vm226, %v257, 0.0
      %296 = vadd.xlane.f32.xlu0 %v295
      %v297 = vpop.xlane.xlu0 %296
      %v298 = vsel %vm226, %v258, 0.0
      %299 = vadd.xlane.f32.xlu0 %v298
      %v300 = vpop.xlane.xlu0 %299
      %v301 = vsel %vm226, %v259, 0.0
      %302 = vadd.xlane.f32.xlu0 %v301
      %v303 = vpop.xlane.xlu0 %302
      %v304 = vsel %vm226, %v260, 0.0
      %305 = vadd.xlane.f32.xlu0 %v304
      %v306 = vpop.xlane.xlu0 %305
      %v307 = vsel %vm226, %v261, 0.0
      %308 = vadd.xlane.f32.xlu0 %v307
      %v309 = vpop.xlane.xlu0 %308
      %v310 = vadd.f32 %v264, %v267
      %v311 = vadd.f32 %v310, %v270
      %v312 = vadd.f32 %v311, %v273
      %v313 = vadd.f32 %v312, %v276
      %v314 = vadd.f32 %v313, %v279
      %v315 = vadd.f32 %v314, %v282
      %v316 = vadd.f32 %v315, %v285
      %v317 = vadd.f32 %v316, %v288
      %v318 = vadd.f32 %v317, %v291
      %v319 = vadd.f32 %v318, %v294
      %v320 = vadd.f32 %v319, %v297
      %v321 = vadd.f32 %v320, %v300
      %v322 = vadd.f32 %v321, %v303
      %v323 = vadd.f32 %v322, %v306
      %v324 = vadd.f32 %v323, %v309
      %v325 = vrot.slane %v324, 4
      %v326 = vadd.f32 %v324, %v325
      %v327 = vrot.slane %v326, 2
      %v328 = vadd.f32 %v326, %v327
      %v329 = vrot.slane %v328, 1
      %v330 = vadd.f32 %v328, %v329
      %vm331 = vcmask 0
      %332 = vst.msk [vmem:[#allocation3] sm:$0x1] %vm331, %v330
    $region21: #{tpu_custom_call.1} parent=1 // pred_fallthru
      _
    // Predicated region
    $region22: #{tpu_custom_call.1} parent=1 // pred_check
      _
    $region23: #{tpu_custom_call.1} parent=1 // pred_check_branch
      %334 = sbr.rel (0) target = $region25
    $region24: #{tpu_custom_call.1} parent=1 // pred_region
      %s336 = ssub.s32 16, 16
      %337 = vsyncadd [#allocation4], %s336
      %s339 = sshll.u32 [#allocation3], 4
      %s340 = int_to_ptr.vmem [resolvable:$true] %s339
      %342 = dma.vmem_to_hbm [thread:$0]  %s340, 16, %s3, [#allocation4]
    $region25: #{tpu_custom_call.1} parent=1 // pred_fallthru
      _
    // Predicated region
    $region26: #{tpu_custom_call.1} parent=1 // pred_check
      _
    $region27: #{tpu_custom_call.1} parent=1 // pred_check_branch
      %344 = sbr.rel (0) target = $region29
    $region28: #{tpu_custom_call.1} parent=1 // pred_region
      %345 = dma.done [#allocation4], 16
    $region29: #{tpu_custom_call.1} parent=1 // pred_fallthru
      _
    %346 = vsyncpa [#allocation4], 1

</llo_original>
